<compile_context>
chip_gen: v7x
topology: tpu7x:2x2x1
jax: 0.10.0
libtpu: 0.0.40
codegen_flags: <defaults>
</compile_context>

<pallas_src>
import jax
import jax.numpy as jnp
import numpy as np
from jax.experimental import pallas as pl
from jax.experimental.pallas import tpu as pltpu

# TODO(synk): the BPE string->id tokenization itself (SentencePiece / Llama
# vocabulary lookup) has no Pallas equivalent; synthetic body ids are used.

# Synthetic special-token ids (stand-ins for the Llama vocab).
BOS_ID = 1
EOS_ID = 2
PAD_ID = 29871                                   # tokenizer.pad_token = ' '
PREFIX_IDS = (23267, 1891, 29901, 29871)         # ids for the "summarize:" prefix
HEADER_IDS = (BOS_ID,) + PREFIX_IDS              # [BOS, prefix...]
H_LEN = len(HEADER_IDS)

_SUBLANE = 8
_LANE = 128


def _tokenizer_pack_kernel(body_ref, len_ref, out_ref):
    """Assemble [BOS, prefix, body, EOS, PAD...] rows; one full-width store.

    body_ref: (TILE_B, MAX_BODY) int32  sub-word ids of the text bodies
    len_ref:  (TILE_B, 1)        int32  number of valid body ids per row
    out_ref:  (TILE_B, W)        int32  W is a multiple of 128 (lane-dense)
    """
    tile_b, width = out_ref.shape
    max_body = body_ref.shape[1]

    # Stage the body ids at lane offset 0 of the output block (aligned masked
    # store), then rotate them to column H_LEN on the XLU.  Lanes not covered
    # by the staging store hold garbage that the selects below fully mask.
    out_ref[:, 0:max_body] = body_ref[...]
    shifted = pltpu.roll(out_ref[...], shift=H_LEN, axis=1)

    cols = jax.lax.broadcasted_iota(jnp.int32, (tile_b, width), 1)

    # Header: BOS + "summarize:" prefix ids — a handful of constant selects
    # (VPU filler under the DMA).
    row = shifted
    for idx, tok in enumerate(HEADER_IDS):
        row = jnp.where(cols == idx, jnp.int32(tok), row)

    # EOS right after the body, PAD to the end of the lane-padded row.
    eos_pos = H_LEN + jnp.clip(len_ref[...], 0, max_body)          # (TILE_B, 1)
    tail = jnp.where(cols == eos_pos, jnp.int32(EOS_ID), jnp.int32(PAD_ID))
    out_ref[...] = jnp.where(cols < eos_pos, row, tail)


def _pick_tile_b(batch, width):
    """Batch tile from a per-step byte budget (~2 MiB of output block)."""
    target_block_bytes = 2 << 20
    tile_b = max(_SUBLANE,
                 (target_block_bytes // (width * 4)) // _SUBLANE * _SUBLANE)
    # For batches big enough to split, keep >= 2 grid steps so v7x's two
    # TensorCores both get work under dimension_semantics=("parallel",).
    if batch >= 2 * _SUBLANE:
        half = ((batch + 1) // 2 + _SUBLANE - 1) // _SUBLANE * _SUBLANE
        tile_b = min(tile_b, half)
    # Small batch: a single block whose leading dim equals the array dim
    # (always a legal block shape) — no row padding needed.
    if batch <= tile_b:
        tile_b = batch
    return tile_b


def _pack_jnp(body_ids, body_lens, width):
    """Plain-XLA fast path for tiny problems (fuses into the consumer)."""
    batch, max_body = body_ids.shape
    cols = jax.lax.broadcasted_iota(jnp.int32, (batch, width), 1)
    header = jnp.asarray(HEADER_IDS, dtype=jnp.int32)
    body_at = jnp.pad(body_ids, ((0, 0), (H_LEN, width - H_LEN - max_body)),
                      constant_values=PAD_ID)
    hdr_at = jnp.pad(jnp.broadcast_to(header[None, :], (batch, H_LEN)),
                     ((0, 0), (0, width - H_LEN)), constant_values=PAD_ID)
    row = jnp.where(cols < H_LEN, hdr_at, body_at)
    eos_pos = (H_LEN + jnp.clip(body_lens, 0, max_body)).reshape(batch, 1)
    return jnp.where(cols < eos_pos, row,
                     jnp.where(cols == eos_pos, EOS_ID, PAD_ID)).astype(jnp.int32)


def internvl_tokenizer_forward(body_ids, body_lens, *, use_pallas=None):
    """body_ids: (B, MAX_B) int, body_lens: (B,) int -> (B, W) int32.

    Row b = [BOS, prefix..., body_ids[b, :len_b], EOS, PAD, ...]
    W = (1 + len(prefix) + MAX_B + 1) rounded up to a multiple of 128; the
    extra trailing columns are PAD_ID (right-padded id matrix semantics are
    unchanged).  Output is int32 (PyTorch tokenizer returns int64).
    """
    body_ids = jnp.asarray(body_ids, dtype=jnp.int32)
    body_lens = jnp.asarray(body_lens, dtype=jnp.int32)
    batch, max_body = body_ids.shape
    out_len = H_LEN + max_body + 1                   # BOS+prefix + body + EOS
    width = (out_len + _LANE - 1) // _LANE * _LANE   # lane-dense

    if use_pallas is None:
        # Tiny problems: skip the fixed pallas_call overhead, let XLA fuse.
        use_pallas = batch * width * 4 >= (256 << 10)
    if not use_pallas:
        return _pack_jnp(body_ids, body_lens, width)

    tile_b = _pick_tile_b(batch, width)
    grid = ((batch + tile_b - 1) // tile_b,)

    return pl.pallas_call(
        _tokenizer_pack_kernel,
        out_shape=jax.ShapeDtypeStruct((batch, width), jnp.int32),
        grid=grid,
        in_specs=[
            pl.BlockSpec((tile_b, max_body), lambda i: (i, 0)),
            pl.BlockSpec((tile_b, 1), lambda i: (i, 0)),
        ],
        out_specs=pl.BlockSpec((tile_b, width), lambda i: (i, 0)),
        compiler_params=pltpu.CompilerParams(
            dimension_semantics=("parallel",),
            vmem_limit_bytes=32 * 1024 * 1024,
        ),
    )(body_ids, body_lens.reshape(batch, 1))


def _numpy_reference(body_ids, body_lens, width):
    batch, max_body = body_ids.shape
    out = np.full((batch, width), PAD_ID, dtype=np.int32)
    for b in range(batch):
        n = int(np.clip(body_lens[b], 0, max_body))
        row = list(HEADER_IDS) + list(np.asarray(body_ids[b, :n])) + [EOS_ID]
        out[b, :len(row)] = row
    return out


if __name__ == "__main__":
    key = jax.random.PRNGKey(0)
    B, MAX_BODY = 2, 8   # batch of 2 "texts", <= 8 body tokens each

    # Deterministic synthetic "tokenized text bodies" + their lengths.
    body_ids = jax.random.randint(
        key, (B, MAX_BODY), minval=3, maxval=32000, dtype=jnp.int32)
    body_lens = jnp.array([5, 8], dtype=jnp.int32)   # second row fills max_body

    # Force the Pallas path (the auto heuristic would use the jnp fast path
    # for a problem this small).
    out = internvl_tokenizer_forward(body_ids, body_lens, use_pallas=True)
    out = jax.block_until_ready(out)

    ref = _numpy_reference(np.asarray(body_ids), np.asarray(body_lens),
                           out.shape[1])
    np.testing.assert_array_equal(np.asarray(out), ref)

    print("KERNEL_OK")
</pallas_src>

<mosaic_0001>
module attributes {stable_mosaic.version = 11 : i64} {
  func.func @_tokenizer_pack_kernel(%arg0: i32, %arg1: memref<2x8xi32, #tpu.memory_space<vmem>>, %arg2: memref<2x1xi32, #tpu.memory_space<vmem>>, %arg3: memref<2x128xi32, #tpu.memory_space<vmem>>) attributes {dimension_semantics = [#tpu.dimension_semantics<parallel>], iteration_bounds = array<i64: 1>, scalar_prefetch = 0 : i64, scratch_operands = 0 : i64, tpu.core_type = #tpu.core_type<tc>, window_params = [{transform_indices = @transform_0, window_bounds = array<i64: 2, 8>}, {transform_indices = @transform_1, window_bounds = array<i64: 2, 1>}, {transform_indices = @transform_2, window_bounds = array<i64: 2, 128>}]} {
    %c0 = arith.constant 0 : index
    %c0_0 = arith.constant 0 : index
    %0 = vector.load %arg1[%c0, %c0_0] : memref<2x8xi32, #tpu.memory_space<vmem>>, vector<2x8xi32>
    %c0_1 = arith.constant 0 : index
    %c0_2 = arith.constant 0 : index
    %1 = vector.load %arg3[%c0_1, %c0_2] : memref<2x128xi32, #tpu.memory_space<vmem>>, vector<2x8xi32>
    tpu.vector_store %arg3[%c0_1, %c0_2], %0 {strides = array<i32>} : memref<2x128xi32, #tpu.memory_space<vmem>>, vector<2x8xi32>,
    %c0_3 = arith.constant 0 : index
    %c0_4 = arith.constant 0 : index
    %2 = vector.load %arg3[%c0_3, %c0_4] : memref<2x128xi32, #tpu.memory_space<vmem>>, vector<2x128xi32>
    %c5_i32 = arith.constant 5 : i32
    %3 = tpu.dynamic_rotate %2 by %c5_i32 dim 1 : vector<2x128xi32>, i32 -> vector<2x128xi32>
    %4 = tpu.iota {dimensions = array<i32: 1>} : vector<2x128xi32>
    %c0_i32 = arith.constant 0 : i32
    %5 = vector.broadcast %c0_i32 : i32 to vector<2x128xi32>
    %6 = arith.cmpi eq, %4, %5 : vector<2x128xi32>
    %c1_i32 = arith.constant 1 : i32
    %7 = vector.broadcast %c1_i32 : i32 to vector<2x128xi32>
    %8 = arith.select %6, %7, %3 : vector<2x128xi1>, vector<2x128xi32>
    %c1_i32_5 = arith.constant 1 : i32
    %9 = vector.broadcast %c1_i32_5 : i32 to vector<2x128xi32>
    %10 = arith.cmpi eq, %4, %9 : vector<2x128xi32>
    %c23267_i32 = arith.constant 23267 : i32
    %11 = vector.broadcast %c23267_i32 : i32 to vector<2x128xi32>
    %12 = arith.select %10, %11, %8 : vector<2x128xi1>, vector<2x128xi32>
    %c2_i32 = arith.constant 2 : i32
    %13 = vector.broadcast %c2_i32 : i32 to vector<2x128xi32>
    %14 = arith.cmpi eq, %4, %13 : vector<2x128xi32>
    %c1891_i32 = arith.constant 1891 : i32
    %15 = vector.broadcast %c1891_i32 : i32 to vector<2x128xi32>
    %16 = arith.select %14, %15, %12 : vector<2x128xi1>, vector<2x128xi32>
    %c3_i32 = arith.constant 3 : i32
    %17 = vector.broadcast %c3_i32 : i32 to vector<2x128xi32>
    %18 = arith.cmpi eq, %4, %17 : vector<2x128xi32>
    %c29901_i32 = arith.constant 29901 : i32
    %19 = vector.broadcast %c29901_i32 : i32 to vector<2x128xi32>
    %20 = arith.select %18, %19, %16 : vector<2x128xi1>, vector<2x128xi32>
    %c4_i32 = arith.constant 4 : i32
    %21 = vector.broadcast %c4_i32 : i32 to vector<2x128xi32>
    %22 = arith.cmpi eq, %4, %21 : vector<2x128xi32>
    %c29871_i32 = arith.constant 29871 : i32
    %23 = vector.broadcast %c29871_i32 : i32 to vector<2x128xi32>
    %24 = arith.select %22, %23, %20 : vector<2x128xi1>, vector<2x128xi32>
    %c0_6 = arith.constant 0 : index
    %c0_7 = arith.constant 0 : index
    %25 = vector.load %arg2[%c0_6, %c0_7] : memref<2x1xi32, #tpu.memory_space<vmem>>, vector<2x1xi32>
    %c0_i32_8 = arith.constant 0 : i32
    %c8_i32 = arith.constant 8 : i32
    %26 = vector.broadcast %c0_i32_8 : i32 to vector<2x1xi32>
    %27 = arith.maxsi %26, %25 : vector<2x1xi32>
    %28 = vector.broadcast %c8_i32 : i32 to vector<2x1xi32>
    %29 = arith.minsi %28, %27 : vector<2x1xi32>
    %c5_i32_9 = arith.constant 5 : i32
    %30 = vector.broadcast %c5_i32_9 : i32 to vector<2x1xi32>
    %31 = arith.addi %30, %29 : vector<2x1xi32>
    %32 = vector.broadcast %31 : vector<2x1xi32> to vector<2x128xi32>
    %33 = arith.cmpi eq, %4, %32 : vector<2x128xi32>
    %c2_i32_10 = arith.constant 2 : i32
    %c29871_i32_11 = arith.constant 29871 : i32
    %34 = vector.broadcast %c2_i32_10 : i32 to vector<2x128xi32>
    %35 = vector.broadcast %c29871_i32_11 : i32 to vector<2x128xi32>
    %36 = arith.select %33, %34, %35 : vector<2x128xi1>, vector<2x128xi32>
    %37 = vector.broadcast %31 : vector<2x1xi32> to vector<2x128xi32>
    %38 = arith.cmpi slt, %4, %37 : vector<2x128xi32>
    %39 = arith.select %38, %24, %36 : vector<2x128xi1>, vector<2x128xi32>
    %c0_12 = arith.constant 0 : index
    %c0_13 = arith.constant 0 : index
    %40 = vector.load %arg3[%c0_12, %c0_13] : memref<2x128xi32, #tpu.memory_space<vmem>>, vector<2x128xi32>
    tpu.vector_store %arg3[%c0_12, %c0_13], %39 {strides = array<i32>} : memref<2x128xi32, #tpu.memory_space<vmem>>, vector<2x128xi32>,
    return
  }
  func.func @transform_0(%arg0: i32) -> (i32, i32) {
    %c0_i32 = arith.constant 0 : i32
    %c0_i32_0 = arith.constant 0 : i32
    return %arg0, %c0_i32 : i32, i32
  }
  func.func @transform_1(%arg0: i32) -> (i32, i32) {
    %c0_i32 = arith.constant 0 : i32
    %c0_i32_0 = arith.constant 0 : i32
    return %arg0, %c0_i32 : i32, i32
  }
  func.func @transform_2(%arg0: i32) -> (i32, i32) {
    %c0_i32 = arith.constant 0 : i32
    %c0_i32_0 = arith.constant 0 : i32
    return %arg0, %c0_i32 : i32, i32
  }
}

</mosaic_0001>

<llo_original>
// kernel: tpu_custom_call.1
$region0: #{tpu_custom_call.1}
  #allocation0 [shape = 'u32[]', space=smem, size = 0x4, offset = 0x4, fixed_abs, tag = 'smem constant byte address 0x4 - core index']
  #allocation1 [shape = 'u32[144,128]{1,0:T(1,128)}', space=vmem, size = 0x12000, scoped, tag = 'internal scratch']
  %s0 = inlined_call_operand.vmem [shape: s32[2,8], index: 0, kind: input, shape index: {}]
  %s1 = inlined_call_operand.vmem [shape: s32[2,1], index: 1, kind: input, shape index: {}]
  %s2 = inlined_call_operand.hbm [shape: s32[2,128], index: 2, kind: output, shape index: {}]
  %s3 = sld [smem:[#allocation0]]
  $region18: #{tpu_custom_call.1} parent=0
    _
  %s5 = ssub.s32 1, %s3
  %s6 = scalar_select 0, %s5, %s3
  $region1: #{tpu_custom_call.1} parent=0
    #allocation2 [shape = 'u8[1024]{0}', space=vmem, size = 0x400, scoped, tag = 'output window, operand 0, single buffered']
    #allocation3 [shape = 's32[1]{0}', space=sflag, size = 0x4, scoped, tag = 'scoped memory for tpu_custom_call.1']
    %7 = vsyncpa [#allocation3], 0
    // Predicated region
    $region2: #{tpu_custom_call.1} parent=1 // pred_check
      _
    $region3: #{tpu_custom_call.1} parent=1 // pred_check_branch
      %9 = sbr.rel (0) target = $region5
    $region4: #{tpu_custom_call.1} parent=1 // pred_region
      _
    $region5: #{tpu_custom_call.1} parent=1 // pred_fallthru
      _
    // Predicated region
    $region6: #{tpu_custom_call.1} parent=1 // pred_check
      _
    $region7: #{tpu_custom_call.1} parent=1 // pred_check_branch
      %11 = sbr.rel (0) target = $region9
    $region8: #{tpu_custom_call.1} parent=1 // pred_region
      _
    $region9: #{tpu_custom_call.1} parent=1 // pred_fallthru
      _
    %v12 = vld [vmem:[%s0] sm:$0x3]
    %vm13 = vcmask 58368
    %14 = vst.msk [vmem:[#allocation2] sm:$0x3] %vm13, %v12
    %v15 = vld [vmem:[#allocation2] sm:$0x3]
    %16 = vrot.lane.b32.xlu0 %v15, 5
    %v17 = vpop.permute.xlu0 %16
    %v18 = vlaneseq
    %v19 = vand.u32 %v18, 127
    %vm20 = vcmp.eq.s32.totalorder %v19, 0
    %v21 = vsel %vm20, 1, %v17
    %vm22 = vcmp.eq.s32.totalorder %v19, 1
    %v23 = vsel %vm22, 23267, %v21
    %vm24 = vcmp.eq.s32.totalorder %v19, 2
    %v25 = vsel %vm24, 1891, %v23
    %vm26 = vcmp.eq.s32.totalorder %v19, 3
    %v27 = vsel %vm26, 29901, %v25
    %vm28 = vcmp.eq.s32.totalorder %v19, 4
    %v29 = vsel %vm28, 29871, %v27
    %v30 = vld [vmem:[%s1] sm:$0x3]
    %vm31 = vcmp.gt.s32.totalorder %v30, 0
    %v32 = vsel %vm31, %v30, 0
    %vm33 = vcmp.lt.s32.totalorder %v32, 8
    %v34 = vsel %vm33, %v32, 8
    %v35 = vadd.s32 %v34, 5
    %36 = vset.pattern.permute.xlu0 0
    %37 = vperm.xlu0 %36, %v35
    %v38 = vpop.permute.xlu0 %37
    %vm39 = vcmp.eq.s32.totalorder %v19, %v38
    %v40 = vsel %vm39, 2, 29871
    %vm41 = vcmp.lt.s32.totalorder %v19, %v38
    %v42 = vsel %vm41, %v29, %v40
    %43 = vst [vmem:[#allocation2] sm:$0x3] %v42
    // Predicated region
    $region10: #{tpu_custom_call.1} parent=1 // pred_check
      _
    $region11: #{tpu_custom_call.1} parent=1 // pred_check_branch
      %45 = sbr.rel (0) target = $region13
    $region12: #{tpu_custom_call.1} parent=1 // pred_region
      %s47 = ssub.s32 32, 32
      %48 = vsyncadd [#allocation3], %s47
      %s50 = sshll.u32 [#allocation2], 4
      %s51 = int_to_ptr.vmem [resolvable:$true] %s50
      %53 = dma.vmem_to_hbm [thread:$0]  %s51, 32, %s2, [#allocation3]
    $region13: #{tpu_custom_call.1} parent=1 // pred_fallthru
      _
    // Predicated region
    $region14: #{tpu_custom_call.1} parent=1 // pred_check
      _
    $region15: #{tpu_custom_call.1} parent=1 // pred_check_branch
      %55 = sbr.rel (0) target = $region17
    $region16: #{tpu_custom_call.1} parent=1 // pred_region
      %56 = dma.done [#allocation3], 32
    $region17: #{tpu_custom_call.1} parent=1 // pred_fallthru
      _
    %57 = vsyncpa [#allocation3], 1

</llo_original>
